<compile_context>
chip_gen: v6e
topology: v6e:2x2x1
jax: 0.10.0
libtpu: 0.0.40
codegen_flags: <defaults>
</compile_context>

<pallas_src>
import functools

import jax
import jax.numpy as jnp
from jax.experimental import pallas as pl
from jax.experimental.pallas import tpu as pltpu


# ---------------- Kernel 1: LayerNorm + router logits/softmax ----------------
def ln_router_kernel(x_ref, g_ref, b_ref, wr_ref, xln_ref, probs_ref, *,
                     eps, num_experts):
    x = x_ref[...].astype(jnp.float32)                        # (TM, H)
    mean = jnp.mean(x, axis=-1, keepdims=True)
    var = jnp.mean(jnp.square(x - mean), axis=-1, keepdims=True)
    xn = (x - mean) * jax.lax.rsqrt(var + eps)
    xln = xn * g_ref[...].astype(jnp.float32) + b_ref[...].astype(jnp.float32)

    xln_lp = xln.astype(xln_ref.dtype)                        # bf16 matmul operand
    xln_ref[...] = xln_lp

    logits = jnp.dot(xln_lp, wr_ref[...],
                     preferred_element_type=jnp.float32)      # (TM, E_pad)
    # Mask the lane-padding columns before the softmax.
    col = jax.lax.broadcasted_iota(jnp.int32, logits.shape, 1)
    logits = jnp.where(col < num_experts, logits, jnp.float32(-1e30))
    m = jnp.max(logits, axis=-1, keepdims=True)
    e = jnp.exp(logits - m)
    probs_ref[...] = (e / jnp.sum(e, axis=-1, keepdims=True)).astype(
        probs_ref.dtype)


# ------------- Kernel 2: per-expert gated MLP + weighted combine -------------
def moe_expert_kernel(act_ref, eff_ref, xln_ref, wg_ref, wu_ref, wd_ref,
                      cw_ref, out_ref, acc_ref, cwcol_ref):
    t_idx = pl.program_id(0)
    e_idx = pl.program_id(1)
    f_idx = pl.program_id(2)
    n_e = pl.num_programs(1)
    n_f = pl.num_programs(2)

    @pl.when((e_idx == 0) & (f_idx == 0))
    def _():
        acc_ref[...] = jnp.zeros_like(acc_ref)

    # Combine-weight column only depends on (token tile, expert): compute it
    # once per expert and reuse across the F loop.
    @pl.when(f_idx == 0)
    def _():
        cw_full = cw_ref[...].astype(jnp.float32)             # (TM, E)
        sel = jax.lax.broadcasted_iota(jnp.int32, cw_full.shape, 1) == e_idx
        cwcol_ref[...] = jnp.sum(jnp.where(sel, cw_full, 0.0), axis=-1,
                                 keepdims=True)

    # Skip all three matmuls when no token in this tile routes to this expert.
    # (The weight DMAs for this case are already deduped by the index_maps.)
    @pl.when(act_ref[t_idx * n_e + e_idx] > 0)
    def _():
        x = xln_ref[...]                                            # (TM, H) bf16
        g = jnp.dot(x, wg_ref[0], preferred_element_type=jnp.float32)  # (TM, TF)
        u = jnp.dot(x, wu_ref[0], preferred_element_type=jnp.float32)  # (TM, TF)
        h = (jax.nn.silu(g) * u).astype(wd_ref.dtype)                  # bf16
        y = jnp.dot(h, wd_ref[0], preferred_element_type=jnp.float32)  # (TM, H)
        acc_ref[...] += cwcol_ref[...] * y

    @pl.when((e_idx == n_e - 1) & (f_idx == n_f - 1))
    def _():
        out_ref[...] = acc_ref[...].astype(out_ref.dtype)


# --------------------------------- Wrapper -----------------------------------
def _round_up(x, m):
    return ((x + m - 1) // m) * m


def _vmem_capacity():
    try:
        info = pltpu.get_tpu_info()
        cap = getattr(info, "vmem_capacity_bytes", None)
        if cap:
            return int(cap)
    except Exception:
        pass
    return 128 * 1024 * 1024


def _pick_token_tile(T):
    # Prefer big token tiles (amortizes expert-weight streaming), but keep at
    # least 2 tiles whenever possible so the "parallel" token axis can be
    # sharded across both v7x TensorCores.
    for tm in (1024, 512, 256, 128):
        if T >= 2 * tm:
            return tm
    if T > 8:
        return _round_up((T + 1) // 2, 8)
    return max(_round_up(T, 8), 8)


def _moe_vmem_bytes(TM, TF, H, E, out_itemsize):
    w = 3 * H * TF * 2 * 2                  # wg/wu/wd bf16 tiles, double-buffered
    xln = TM * H * 2 * 2                    # bf16 activations, double-buffered
    comb = TM * max(E, 128) * 4 * 2         # combine weights (lane-padded)
    out = TM * H * out_itemsize * 2         # output tile, double-buffered
    acc = TM * H * 4                        # f32 accumulator scratch
    cw = TM * 128 * 4                       # (TM,1) scratch, lane-padded
    return w + xln + comb + out + acc + cw


def _ln_vmem_bytes(TM, H, E_pad, in_itemsize):
    x = TM * H * in_itemsize * 2
    xln = TM * H * 2 * 2
    probs = TM * E_pad * 4 * 2
    wr = H * E_pad * 2 * 2
    gb = 2 * H * 4 * 2
    return x + xln + probs + wr + gb


def layer_norm_moe_forward(x, ln_w, ln_b, w_router, w_gate, w_up, w_down,
                           *, topk, eps, matmul_dtype=jnp.bfloat16):
    T, H = x.shape
    E = w_router.shape[1]
    F = w_gate.shape[2]
    out_dtype = x.dtype
    out_itemsize = jnp.dtype(out_dtype).itemsize
    in_itemsize = jnp.dtype(x.dtype).itemsize

    cap = _vmem_capacity()
    budget = int(cap * 0.8)

    # --- tile selection, fit to the generation's VMEM capacity --------------
    tf_prefs = (256, 128) if cap <= 96 * 1024 * 1024 else (512, 256, 128)
    TF = F
    for c in tf_prefs:
        if F >= c and F % c == 0:
            TF = c
            break

    TM = _pick_token_tile(T)
    while _moe_vmem_bytes(TM, TF, H, E, out_itemsize) > budget and TM >= 256:
        TM //= 2
    while (_moe_vmem_bytes(TM, TF, H, E, out_itemsize) > budget
           and TF > 128 and F % (TF // 2) == 0):
        TF //= 2

    nf = F // TF
    T_pad = _round_up(T, TM)
    nt = T_pad // TM

    # LayerNorm+router kernel is small/memory-bound; cap its token tile.
    TM1 = TM if TM <= 512 else 512
    E_pad = max(128, _round_up(E, 128))
    while (_ln_vmem_bytes(TM1, H, E_pad, in_itemsize) > budget
           and TM1 % 16 == 0 and TM1 > 8):
        TM1 //= 2

    x_pad = x if T_pad == T else jnp.pad(x, ((0, T_pad - T), (0, 0)))

    # bf16 matmul operands (accumulation stays f32 inside the kernels).
    wr = jnp.pad(w_router.astype(matmul_dtype), ((0, 0), (0, E_pad - E)))
    wg = w_gate.astype(matmul_dtype)
    wu = w_up.astype(matmul_dtype)
    wd = w_down.astype(matmul_dtype)

    vlimit1 = int(min(int(cap * 0.9),
                      max(_ln_vmem_bytes(TM1, H, E_pad, in_itemsize)
                          + (8 << 20), 32 << 20)))
    vlimit2 = int(min(int(cap * 0.9),
                      max(_moe_vmem_bytes(TM, TF, H, E, out_itemsize)
                          + (8 << 20), 32 << 20)))

    # ---------------- Kernel 1: LayerNorm + router ---------------------------
    ln_cost = pl.CostEstimate(
        flops=int(10 * T_pad * H + 2 * T_pad * H * E_pad),
        transcendentals=int(T_pad * E_pad + T_pad),
        bytes_accessed=int(T_pad * H * (in_itemsize + 2) + T_pad * E_pad * 4
                           + H * E_pad * 2 + 2 * H * 4),
    )
    xln, probs_pad = pl.pallas_call(
        functools.partial(ln_router_kernel, eps=eps, num_experts=E),
        grid=(T_pad // TM1,),
        in_specs=[pl.BlockSpec((TM1, H), lambda t: (t, 0)),
                  pl.BlockSpec((1, H), lambda t: (0, 0)),
                  pl.BlockSpec((1, H), lambda t: (0, 0)),
                  pl.BlockSpec((H, E_pad), lambda t: (0, 0))],
        out_specs=[pl.BlockSpec((TM1, H), lambda t: (t, 0)),
                   pl.BlockSpec((TM1, E_pad), lambda t: (t, 0))],
        out_shape=[jax.ShapeDtypeStruct((T_pad, H), matmul_dtype),
                   jax.ShapeDtypeStruct((T_pad, E_pad), jnp.float32)],
        compiler_params=pltpu.CompilerParams(
            dimension_semantics=("parallel",),
            vmem_limit_bytes=vlimit1),
        cost_estimate=ln_cost,
    )(x_pad, ln_w, ln_b, wr)

    # --- Top-k routing glue (XLA) --------------------------------------------
    probs = probs_pad[:, :E]
    topk_probs, topk_idx = jax.lax.top_k(probs, topk)                 # (T_pad, k)
    combine = jnp.zeros((T_pad, E), jnp.float32).at[
        jnp.arange(T_pad)[:, None], topk_idx].add(topk_probs)         # (T_pad, E)
    valid = (jnp.arange(T_pad) < T).astype(jnp.float32)[:, None]
    combine = combine * valid                                         # zero pad rows

    # Per-(token-tile, expert) activity and effective weight-fetch expert.
    # `eff` repeats the most recent active expert across inactive runs so the
    # wg/wu/wd index_maps return an unchanged block index there and Pallas
    # dedups the weight DMAs.
    active2d = (combine.reshape(nt, TM, E) > 0).any(axis=1)           # (nt, E)
    active = active2d.astype(jnp.int32).reshape(-1)                   # (nt*E,)
    expert_ids = jnp.arange(E, dtype=jnp.int32)[None, :]
    eff = jnp.where(active2d, expert_ids, -1)
    eff = jax.lax.cummax(eff, axis=1)
    eff = jnp.where(eff >= 0, eff, 0).astype(jnp.int32).reshape(-1)   # (nt*E,)

    # ---------------- Kernel 2: expert MLPs + weighted combine ---------------
    def _x_map(t, e, f, act, effm):
        return (t, 0)

    def _wg_map(t, e, f, act, effm):
        idx = t * E + e
        a = act[idx]
        return (effm[idx], 0, f * a + (nf - 1) * (1 - a))

    def _wd_map(t, e, f, act, effm):
        idx = t * E + e
        a = act[idx]
        return (effm[idx], f * a + (nf - 1) * (1 - a), 0)

    def _cw_map(t, e, f, act, effm):
        return (t, 0)

    def _out_map(t, e, f, act, effm):
        return (t, 0)

    moe_cost = pl.CostEstimate(
        flops=int(6 * T_pad * E * H * F),
        transcendentals=int(T_pad * E * F),
        bytes_accessed=int(T_pad * H * 2 + nt * 3 * E * H * F * 2
                           + T_pad * E * 4 + T_pad * H * out_itemsize),
    )
    out = pl.pallas_call(
        moe_expert_kernel,
        grid_spec=pltpu.PrefetchScalarGridSpec(
            num_scalar_prefetch=2,
            grid=(nt, E, nf),
            in_specs=[
                pl.BlockSpec((TM, H), _x_map),
                pl.BlockSpec((1, H, TF), _wg_map),
                pl.BlockSpec((1, H, TF), _wg_map),
                pl.BlockSpec((1, TF, H), _wd_map),
                pl.BlockSpec((TM, E), _cw_map),
            ],
            out_specs=pl.BlockSpec((TM, H), _out_map),
            scratch_shapes=[pltpu.VMEM((TM, H), jnp.float32),
                            pltpu.VMEM((TM, 1), jnp.float32)],
        ),
        out_shape=jax.ShapeDtypeStruct((T_pad, H), out_dtype),
        compiler_params=pltpu.CompilerParams(
            dimension_semantics=("parallel", "arbitrary", "arbitrary"),
            vmem_limit_bytes=vlimit2),
        cost_estimate=moe_cost,
    )(active, eff, xln, wg, wu, wd, combine)

    return out[:T]


if __name__ == "__main__":
    # Small, deterministic synthetic configuration.
    B, S, H, F, E, K = 2, 8, 32, 64, 4, 2
    EPS = 1e-5

    key = jax.random.PRNGKey(0)
    ks = jax.random.split(key, 7)
    x = jax.random.normal(ks[0], (B, S, H), jnp.float32)
    ln_w = 1.0 + 0.1 * jax.random.normal(ks[1], (1, H), jnp.float32)
    ln_b = 0.1 * jax.random.normal(ks[2], (1, H), jnp.float32)
    w_router = 0.1 * jax.random.normal(ks[3], (H, E), jnp.float32)
    w_gate = 0.1 * jax.random.normal(ks[4], (E, H, F), jnp.float32)
    w_up = 0.1 * jax.random.normal(ks[5], (E, H, F), jnp.float32)
    w_down = 0.1 * jax.random.normal(ks[6], (E, F, H), jnp.float32)

    x_flat = x.reshape(B * S, H)
    out = layer_norm_moe_forward(x_flat, ln_w, ln_b, w_router,
                                 w_gate, w_up, w_down, topk=K, eps=EPS)
    out = out.reshape(B, S, H)
    jax.block_until_ready(out)
    assert out.shape == (B, S, H)
    assert bool(jnp.all(jnp.isfinite(out)))
    assert float(jnp.max(jnp.abs(out))) > 0.0
    print("KERNEL_OK")
</pallas_src>

<mosaic_0001>
module attributes {stable_mosaic.version = 11 : i64} {
  func.func @ln_router_kernel(%arg0: i32, %arg1: memref<8x32xf32, #tpu.memory_space<vmem>>, %arg2: memref<1x32xf32, #tpu.memory_space<vmem>>, %arg3: memref<1x32xf32, #tpu.memory_space<vmem>>, %arg4: memref<32x128xbf16, #tpu.memory_space<vmem>>, %arg5: memref<8x32xbf16, #tpu.memory_space<vmem>>, %arg6: memref<8x128xf32, #tpu.memory_space<vmem>>) attributes {dimension_semantics = [#tpu.dimension_semantics<parallel>], iteration_bounds = array<i64: 2>, scalar_prefetch = 0 : i64, scratch_operands = 0 : i64, tpu.core_type = #tpu.core_type<tc>, window_params = [{transform_indices = @transform_0, window_bounds = array<i64: 8, 32>}, {pipeline_mode = #tpu.pipeline_mode<synchronous>, transform_indices = @transform_1, window_bounds = array<i64: 1, 32>}, {pipeline_mode = #tpu.pipeline_mode<synchronous>, transform_indices = @transform_2, window_bounds = array<i64: 1, 32>}, {pipeline_mode = #tpu.pipeline_mode<synchronous>, transform_indices = @transform_3, window_bounds = array<i64: 32, 128>}, {transform_indices = @transform_4, window_bounds = array<i64: 8, 32>}, {transform_indices = @transform_5, window_bounds = array<i64: 8, 128>}]} {
    %c0 = arith.constant 0 : index
    %c0_0 = arith.constant 0 : index
    %0 = vector.load %arg1[%c0, %c0_0] : memref<8x32xf32, #tpu.memory_space<vmem>>, vector<8x32xf32>
    %cst = arith.constant dense<0.000000e+00> : vector<8xf32>
    %1 = vector.multi_reduction <add>, %0, %cst [1] : vector<8x32xf32> to vector<8xf32>
    %2 = vector.shape_cast %1 : vector<8xf32> to vector<8x1xf32>
    %cst_1 = arith.constant 3.200000e+01 : f32
    %3 = vector.broadcast %cst_1 : f32 to vector<8x1xf32>
    %4 = arith.divf %2, %3 : vector<8x1xf32>
    %5 = vector.broadcast %4 : vector<8x1xf32> to vector<8x32xf32>
    %6 = arith.subf %0, %5 : vector<8x32xf32>
    %7 = arith.mulf %6, %6 : vector<8x32xf32>
    %cst_2 = arith.constant dense<0.000000e+00> : vector<8xf32>
    %8 = vector.multi_reduction <add>, %7, %cst_2 [1] : vector<8x32xf32> to vector<8xf32>
    %9 = vector.shape_cast %8 : vector<8xf32> to vector<8x1xf32>
    %cst_3 = arith.constant 3.200000e+01 : f32
    %10 = vector.broadcast %cst_3 : f32 to vector<8x1xf32>
    %11 = arith.divf %9, %10 : vector<8x1xf32>
    %12 = vector.broadcast %4 : vector<8x1xf32> to vector<8x32xf32>
    %13 = arith.subf %0, %12 : vector<8x32xf32>
    %cst_4 = arith.constant 9.99999974E-6 : f32
    %14 = vector.broadcast %cst_4 : f32 to vector<8x1xf32>
    %15 = arith.addf %11, %14 : vector<8x1xf32>
    %16 = math.rsqrt %15 : vector<8x1xf32>
    %17 = vector.broadcast %16 : vector<8x1xf32> to vector<8x32xf32>
    %18 = arith.mulf %13, %17 : vector<8x32xf32>
    %c0_5 = arith.constant 0 : index
    %c0_6 = arith.constant 0 : index
    %19 = vector.load %arg2[%c0_5, %c0_6] : memref<1x32xf32, #tpu.memory_space<vmem>>, vector<1x32xf32>
    %20 = vector.broadcast %19 : vector<1x32xf32> to vector<8x32xf32>
    %21 = arith.mulf %18, %20 : vector<8x32xf32>
    %c0_7 = arith.constant 0 : index
    %c0_8 = arith.constant 0 : index
    %22 = vector.load %arg3[%c0_7, %c0_8] : memref<1x32xf32, #tpu.memory_space<vmem>>, vector<1x32xf32>
    %23 = vector.broadcast %22 : vector<1x32xf32> to vector<8x32xf32>
    %24 = arith.addf %21, %23 : vector<8x32xf32>
    %25 = arith.truncf %24 : vector<8x32xf32> to vector<8x32xbf16>
    %c0_9 = arith.constant 0 : index
    %c0_10 = arith.constant 0 : index
    %26 = vector.load %arg5[%c0_9, %c0_10] : memref<8x32xbf16, #tpu.memory_space<vmem>>, vector<8x32xbf16>
    tpu.vector_store %arg5[%c0_9, %c0_10], %25 {strides = array<i32>} : memref<8x32xbf16, #tpu.memory_space<vmem>>, vector<8x32xbf16>,
    %c0_11 = arith.constant 0 : index
    %c0_12 = arith.constant 0 : index
    %27 = vector.load %arg4[%c0_11, %c0_12] : memref<32x128xbf16, #tpu.memory_space<vmem>>, vector<32x128xbf16>
    %cst_13 = arith.constant dense<0.000000e+00> : vector<8x128xf32>
    %28 = tpu.matmul %25, %27, %cst_13 {dimension_numbers = #tpu.dot_dimension_numbers<[1], [0], [0], [1], [0, 0, 1, 1], [], []>} : vector<8x32xbf16>, vector<32x128xbf16>, vector<8x128xf32> -> vector<8x128xf32>
    %29 = tpu.iota {dimensions = array<i32: 1>} : vector<8x128xi32>
    %c4_i32 = arith.constant 4 : i32
    %30 = vector.broadcast %c4_i32 : i32 to vector<8x128xi32>
    %31 = arith.cmpi slt, %29, %30 : vector<8x128xi32>
    %cst_14 = arith.constant -1.000000e+30 : f32
    %32 = vector.broadcast %cst_14 : f32 to vector<8x128xf32>
    %33 = arith.select %31, %28, %32 : vector<8x128xi1>, vector<8x128xf32>
    %cst_15 = arith.constant dense<0xFF800000> : vector<8xf32>
    %34 = vector.multi_reduction <maximumf>, %33, %cst_15 [1] : vector<8x128xf32> to vector<8xf32>
    %35 = vector.shape_cast %34 : vector<8xf32> to vector<8x1xf32>
    %36 = vector.broadcast %35 : vector<8x1xf32> to vector<8x128xf32>
    %37 = arith.subf %33, %36 : vector<8x128xf32>
    %38 = math.exp %37 : vector<8x128xf32>
    %cst_16 = arith.constant dense<0.000000e+00> : vector<8xf32>
    %39 = vector.multi_reduction <add>, %38, %cst_16 [1] : vector<8x128xf32> to vector<8xf32>
    %40 = vector.shape_cast %39 : vector<8xf32> to vector<8x1xf32>
    %41 = vector.broadcast %40 : vector<8x1xf32> to vector<8x128xf32>
    %42 = arith.divf %38, %41 : vector<8x128xf32>
    %c0_17 = arith.constant 0 : index
    %c0_18 = arith.constant 0 : index
    %43 = vector.load %arg6[%c0_17, %c0_18] : memref<8x128xf32, #tpu.memory_space<vmem>>, vector<8x128xf32>
    tpu.vector_store %arg6[%c0_17, %c0_18], %42 {strides = array<i32>} : memref<8x128xf32, #tpu.memory_space<vmem>>, vector<8x128xf32>,
    return
  }
  func.func @transform_0(%arg0: i32) -> (i32, i32) {
    %c0_i32 = arith.constant 0 : i32
    %c0_i32_0 = arith.constant 0 : i32
    return %arg0, %c0_i32 : i32, i32
  }
  func.func @transform_1(%arg0: i32) -> (i32, i32) {
    %c0_i32 = arith.constant 0 : i32
    %c0_i32_0 = arith.constant 0 : i32
    %c0_i32_1 = arith.constant 0 : i32
    return %c0_i32, %c0_i32_0 : i32, i32
  }
  func.func @transform_2(%arg0: i32) -> (i32, i32) {
    %c0_i32 = arith.constant 0 : i32
    %c0_i32_0 = arith.constant 0 : i32
    %c0_i32_1 = arith.constant 0 : i32
    return %c0_i32, %c0_i32_0 : i32, i32
  }
  func.func @transform_3(%arg0: i32) -> (i32, i32) {
    %c0_i32 = arith.constant 0 : i32
    %c0_i32_0 = arith.constant 0 : i32
    %c0_i32_1 = arith.constant 0 : i32
    return %c0_i32, %c0_i32_0 : i32, i32
  }
  func.func @transform_4(%arg0: i32) -> (i32, i32) {
    %c0_i32 = arith.constant 0 : i32
    %c0_i32_0 = arith.constant 0 : i32
    return %arg0, %c0_i32 : i32, i32
  }
  func.func @transform_5(%arg0: i32) -> (i32, i32) {
    %c0_i32 = arith.constant 0 : i32
    %c0_i32_0 = arith.constant 0 : i32
    return %arg0, %c0_i32 : i32, i32
  }
}

</mosaic_0001>

<llo_original>
// kernel: tpu_custom_call.1
$region0: #{tpu_custom_call.1}
  #allocation0 [shape = 'u32[]', space=smem, size = 0x4, offset = 0x4, fixed_abs, tag = 'smem constant byte address 0x4 - core index']
  #allocation1 [shape = 'u32[144,128]{1,0:T(1,128)}', space=vmem, size = 0x12000, scoped, tag = 'internal scratch']
  %s0 = inlined_call_operand.hbm [shape: f32[16,32], index: 0, kind: input, shape index: {}]
  %s1 = inlined_call_operand.vmem [shape: f32[1,32], index: 1, kind: input, shape index: {}]
  %s2 = inlined_call_operand.vmem [shape: f32[1,32], index: 2, kind: input, shape index: {}]
  %s3 = inlined_call_operand.hbm [shape: bf16[32,128], index: 3, kind: input, shape index: {}]
  %s4 = inlined_call_operand.hbm [shape: bf16[16,32], index: 4, kind: output, shape index: {0}]
  %s5 = inlined_call_operand.hbm [shape: f32[16,128], index: 5, kind: output, shape index: {1}]
  %6 = xla_tuple %s4, %s5
  %s7 = sld [smem:[#allocation0]]
  $region65: #{tpu_custom_call.1} parent=0
    _
  %s9 = ssub.s32 1, %s7
  %s10 = scalar_select 0, %s9, %s7
  $region1: #{tpu_custom_call.1} parent=0
    #allocation2 [shape = 'u8[8192]{0}', space=vmem, size = 0x2000, scoped, tag = 'input window, operand 0']
    #allocation3 [shape = 's32[2]{0}', space=sflag, size = 0x8, scoped, tag = 'scoped memory for tpu_custom_call.1']
    #allocation4 [shape = 's32[2]{0}', space=sflag, size = 0x8, scoped, tag = 'scoped memory for tpu_custom_call.1']
    #allocation5 [shape = 'u8[8192]{0}', space=vmem, size = 0x2000, scoped, tag = 'input window, operand 3, single buffered']
    #allocation6 [shape = 's32[1]{0}', space=sflag, size = 0x4, scoped, tag = 'scoped memory for tpu_custom_call.1']
    #allocation7 [shape = 'u8[4096]{0}', space=vmem, size = 0x1000, scoped, tag = 'output window, operand 0']
    #allocation8 [shape = 'u8[8192]{0}', space=vmem, size = 0x2000, scoped, tag = 'output window, operand 1']
    #allocation9 [shape = 's32[2]{0}', space=sflag, size = 0x8, scoped, tag = 'scoped memory for tpu_custom_call.1']
    %11 = vsyncpa [#allocation3], 0
    %s12 = scalar_lea.sflag [#allocation3], 1
    %13 = vsyncpa %s12, 0
    %14 = vsyncpa [#allocation6], 0
    %15 = vsyncpa [#allocation4], 0
    %s16 = scalar_lea.sflag [#allocation4], 1
    %17 = vsyncpa %s16, 0
    %18 = vsyncpa [#allocation9], 0
    %s19 = scalar_lea.sflag [#allocation9], 1
    %20 = vsyncpa %s19, 0
    loop: start=0, step=1, limit=4
    $region2: #{tpu_custom_call.1} parent=1 // loop_pre_header
      _
    $region3: #{tpu_custom_call.1} parent=1 // loop_header
      %s22 = sphi 0, %s26
      %p23 = scmp.ge.s32.totalorder %s22, 4
      %s32 = sphi 0, %s34
      %s35 = sphi 0, %s32
      %s36 = sphi 0, %s35
      %s52 = sphi 0, %s36
      %s56 = sphi 0, %s56
      %s58 = sphi 0, %s56
      %s59 = sphi 0, %s58
      %s73 = sphi 0, %s59
      %s77 = sphi 0, %s77
      %s79 = sphi 0, %s77
      %s80 = sphi 0, %s79
      %s94 = sphi 0, %s80
      %s98 = sphi 0, %s98
      %s100 = sphi 0, %s98
      %s101 = sphi 0, %s100
      %s115 = sphi 0, %s101
      %s121 = sphi 0, %s123
      %s124 = sphi 0, %s121
      %s125 = sphi 0, %s124
      %s141 = sphi 0, %s125
      %s147 = sphi 0, %s149
      %s150 = sphi 0, %s147
      %s151 = sphi 0, %s150
      %s167 = sphi 0, %s151
    $region4: #{tpu_custom_call.1} parent=1 // loop_header_branch
      %25 = sbr.rel (%p23) target = $region8
    $region5: #{tpu_custom_call.1} parent=1 // loop_body
      %s27 = ssub.s32 %s22, 1
      %s28 = ssub.s32 %s22, 2
      %s29 = sadd.s32 %s22, 1
      %s30 = ssub.s32 %s22, %s29
      %p31 = scmp.eq.s32.totalorder %s30, 0
      %s33 = sadd.s32 %s32, 1
      %s34 = scalar_select %p31, %s32, %s33
      %p37 = pneg %p31
      %p38 = scmp.eq.s32.totalorder %s22, 1
      %p39 = por %p37, %p38
      %p40 = scmp.ne.s32.totalorder %s32, %s35
      %p41 = scmp.eq.s32.totalorder %s22, 0
      %p42 = por %p40, %p41
      %p43 = scmp.ne.s32.totalorder %s32, %s35
      %p44 = scmp.eq.s32.totalorder %s27, 1
      %p45 = por %p43, %p44
      %p46 = scmp.ne.s32.totalorder %s35, %s36
      %p47 = scmp.eq.s32.totalorder %s27, 0
      %p48 = por %p46, %p47
      %p49 = scmp.ne.s32.totalorder %s35, %s36
      %p50 = scmp.eq.s32.totalorder %s28, 1
      %p51 = por %p49, %p50
      %p53 = scmp.ne.s32.totalorder %s36, %s52
      %p54 = scmp.eq.s32.totalorder %s28, 0
      %p55 = por %p53, %p54
      %s57 = sadd.s32 %s56, 1
      %p60 = scmp.eq.s32.totalorder %s22, 1
      %p61 = scmp.ne.s32.totalorder %s56, %s58
      %p62 = scmp.eq.s32.totalorder %s22, 0
      %p63 = por %p61, %p62
      %p64 = scmp.ne.s32.totalorder %s56, %s58
      %p65 = scmp.eq.s32.totalorder %s27, 1
      %p66 = por %p64, %p65
      %p67 = scmp.ne.s32.totalorder %s58, %s59
      %p68 = scmp.eq.s32.totalorder %s27, 0
      %p69 = por %p67, %p68
      %p70 = scmp.ne.s32.totalorder %s58, %s59
      %p71 = scmp.eq.s32.totalorder %s28, 1
      %p72 = por %p70, %p71
      %p74 = scmp.ne.s32.totalorder %s59, %s73
      %p75 = scmp.eq.s32.totalorder %s28, 0
      %p76 = por %p74, %p75
      %s78 = sadd.s32 %s77, 1
      %p81 = scmp.eq.s32.totalorder %s22, 1
      %p82 = scmp.ne.s32.totalorder %s77, %s79
      %p83 = scmp.eq.s32.totalorder %s22, 0
      %p84 = por %p82, %p83
      %p85 = scmp.ne.s32.totalorder %s77, %s79
      %p86 = scmp.eq.s32.totalorder %s27, 1
      %p87 = por %p85, %p86
      %p88 = scmp.ne.s32.totalorder %s79, %s80
      %p89 = scmp.eq.s32.totalorder %s27, 0
      %p90 = por %p88, %p89
      %p91 = scmp.ne.s32.totalorder %s79, %s80
      %p92 = scmp.eq.s32.totalorder %s28, 1
      %p93 = por %p91, %p92
      %p95 = scmp.ne.s32.totalorder %s80, %s94
      %p96 = scmp.eq.s32.totalorder %s28, 0
      %p97 = por %p95, %p96
      %s99 = sadd.s32 %s98, 1
      %p102 = scmp.eq.s32.totalorder %s22, 1
      %p103 = scmp.ne.s32.totalorder %s98, %s100
      %p104 = scmp.eq.s32.totalorder %s22, 0
      %p105 = por %p103, %p104
      %p106 = scmp.ne.s32.totalorder %s98, %s100
      %p107 = scmp.eq.s32.totalorder %s27, 1
      %p108 = por %p106, %p107
      %p109 = scmp.ne.s32.totalorder %s100, %s101
      %p110 = scmp.eq.s32.totalorder %s27, 0
      %p111 = por %p109, %p110
      %p112 = scmp.ne.s32.totalorder %s100, %s101
      %p113 = scmp.eq.s32.totalorder %s28, 1
      %p114 = por %p112, %p113
      %p116 = scmp.ne.s32.totalorder %s101, %s115
      %p117 = scmp.eq.s32.totalorder %s28, 0
      %p118 = por %p116, %p117
      %s119 = ssub.s32 %s22, %s29
      %p120 = scmp.eq.s32.totalorder %s119, 0
      %s122 = sadd.s32 %s121, 1
      %s123 = scalar_select %p120, %s121, %s122
      %p126 = pneg %p120
      %p127 = scmp.eq.s32.totalorder %s22, 1
      %p128 = por %p126, %p127
      %p129 = scmp.ne.s32.totalorder %s121, %s124
      %p130 = scmp.eq.s32.totalorder %s22, 0
      %p131 = por %p129, %p130
      %p132 = scmp.ne.s32.totalorder %s121, %s124
      %p133 = scmp.eq.s32.totalorder %s27, 1
      %p134 = por %p132, %p133
      %p135 = scmp.ne.s32.totalorder %s124, %s125
      %p136 = scmp.eq.s32.totalorder %s27, 0
      %p137 = por %p135, %p136
      %p138 = scmp.ne.s32.totalorder %s124, %s125
      %p139 = scmp.eq.s32.totalorder %s28, 1
      %p140 = por %p138, %p139
      %p142 = scmp.ne.s32.totalorder %s125, %s141
      %p143 = scmp.eq.s32.totalorder %s28, 0
      %p144 = por %p142, %p143
      %s145 = ssub.s32 %s22, %s29
      %p146 = scmp.eq.s32.totalorder %s145, 0
      %s148 = sadd.s32 %s147, 1
      %s149 = scalar_select %p146, %s147, %s148
      %p152 = pneg %p146
      %p153 = scmp.eq.s32.totalorder %s22, 1
      %p154 = por %p152, %p153
      %p155 = scmp.ne.s32.totalorder %s147, %s150
      %p156 = scmp.eq.s32.totalorder %s22, 0
      %p157 = por %p155, %p156
      %p158 = scmp.ne.s32.totalorder %s147, %s150
      %p159 = scmp.eq.s32.totalorder %s27, 1
      %p160 = por %p158, %p159
      %p161 = scmp.ne.s32.totalorder %s150, %s151
      %p162 = scmp.eq.s32.totalorder %s27, 0
      %p163 = por %p161, %p162
      %p164 = scmp.ne.s32.totalorder %s150, %s151
      %p165 = scmp.eq.s32.totalorder %s28, 1
      %p166 = por %p164, %p165
      %p168 = scmp.ne.s32.totalorder %s151, %s167
      %p169 = scmp.eq.s32.totalorder %s28, 0
      %p170 = por %p168, %p169
      %p171 = scmp.le.s32.totalorder 1, %s22
      %p172 = scmp.lt.s32.totalorder %s22, 3
      %p173 = pnand %p171, %p172
      %p174 = pneg %p173
      // Predicated region
      $region9: #{tpu_custom_call.1} parent=5 // pred_check
        _
      $region10: #{tpu_custom_call.1} parent=5 // pred_check_branch
        %176 = sbr.rel (%p173) target = $region12
      $region11: #{tpu_custom_call.1} parent=5 // pred_region
        %s177 = ssub.s32 %s22, 1
        // Predicated region
        $region13: #{tpu_custom_call.1} parent=11 // pred_check
          %p178 = pneg %p69
        $region14: #{tpu_custom_call.1} parent=11 // pred_check_branch
          %180 = sbr.rel (%p178) target = $region16
        $region15: #{tpu_custom_call.1} parent=11 // pred_region
          _
        $region16: #{tpu_custom_call.1} parent=11 // pred_fallthru
          _
        // Predicated region
        $region17: #{tpu_custom_call.1} parent=11 // pred_check
          %p181 = pneg %p90
        $region18: #{tpu_custom_call.1} parent=11 // pred_check_branch
          %183 = sbr.rel (%p181) target = $region20
        $region19: #{tpu_custom_call.1} parent=11 // pred_region
          _
        $region20: #{tpu_custom_call.1} parent=11 // pred_fallthru
          _
        // Predicated region
        $region21: #{tpu_custom_call.1} parent=11 // pred_check
          %p184 = pneg %p111
        $region22: #{tpu_custom_call.1} parent=11 // pred_check_branch
          %186 = sbr.rel (%p184) target = $region24
        $region23: #{tpu_custom_call.1} parent=11 // pred_region
          %s188 = ssub.s32 256, 256
          %189 = vsyncadd [#allocation6], %s188
          %s190 = sshll.u32 [#allocation5], 4
          %s191 = int_to_ptr.vmem [resolvable:$true] %s190
          %196 = dma.hbm_to_vmem [thread:$0]  %s3, 256, %s191, [#allocation6], 64, 64, 4
        $region24: #{tpu_custom_call.1} parent=11 // pred_fallthru
          _
      $region12: #{tpu_custom_call.1} parent=5 // pred_fallthru
        _
      %p197 = scmp.lt.s32.totalorder %s22, 2
      // Predicated region
      $region25: #{tpu_custom_call.1} parent=5 // pred_check
        %p198 = pneg %p197
      $region26: #{tpu_custom_call.1} parent=5 // pred_check_branch
        %200 = sbr.rel (%p198) target = $region28
      $region27: #{tpu_custom_call.1} parent=5 // pred_region
        // Predicated region
        $region29: #{tpu_custom_call.1} parent=27 // pred_check
          %p201 = pneg %p42
        $region30: #{tpu_custom_call.1} parent=27 // pred_check_branch
          %203 = sbr.rel (%p201) target = $region32
        $region31: #{tpu_custom_call.1} parent=27 // pred_region
          %s204 = sand.u32 %s32, 1
          %s205 = scalar_lea.sflag [#allocation3], %s204
          %s206 = sand.u32 %s32, 1
          %s207 = smul.addr %s206, 8
          %s208 = scalar_lea.vmem [#allocation2], %s207
          %s210 = ssub.s32 128, 128
          %211 = vsyncadd %s205, %s210
          %s212 = smul.addr %s22, 128
          %s213 = scalar_lea.hbm %s0, %s212
          %s215 = sshll.u32 %s208, 4
          %s216 = int_to_ptr.vmem [resolvable:$true] %s215
          %218 = dma.hbm_to_vmem [thread:$0]  %s213, 128, %s216, %s205
        $region32: #{tpu_custom_call.1} parent=27 // pred_fallthru
          _
      $region28: #{tpu_custom_call.1} parent=5 // pred_fallthru
        _
      %p219 = scmp.le.s32.totalorder 1, %s22
      %p220 = scmp.lt.s32.totalorder %s22, 3
      %p221 = pnand %p219, %p220
      %p222 = pneg %p221
      // Predicated region
      $region33: #{tpu_custom_call.1} parent=5 // pred_check
        _
      $region34: #{tpu_custom_call.1} parent=5 // pred_check_branch
        %224 = sbr.rel (%p221) target = $region36
      $region35: #{tpu_custom_call.1} parent=5 // pred_region
        %s225 = ssub.s32 %s22, 1
        %s226 = sand.u32 %s35, 1
        %s227 = scalar_lea.sflag [#allocation3], %s226
        %s228 = sand.u32 %s35, 1
        %s229 = smul.addr %s228, 8
        %s230 = scalar_lea.vmem [#allocation2], %s229
        // Predicated region
        $region37: #{tpu_custom_call.1} parent=35 // pred_check
          %p231 = pneg %p48
        $region38: #{tpu_custom_call.1} parent=35 // pred_check_branch
          %233 = sbr.rel (%p231) target = $region40
        $region39: #{tpu_custom_call.1} parent=35 // pred_region
          %234 = dma.done %s227, 128
        $region40: #{tpu_custom_call.1} parent=35 // pred_fallthru
          _
        // Predicated region
        $region41: #{tpu_custom_call.1} parent=35 // pred_check
          %p235 = pneg %p111
        $region42: #{tpu_custom_call.1} parent=35 // pred_check_branch
          %237 = sbr.rel (%p235) target = $region44
        $region43: #{tpu_custom_call.1} parent=35 // pred_region
          %238 = dma.done [#allocation6], 256
        $region44: #{tpu_custom_call.1} parent=35 // pred_fallthru
          _
        %s239 = sand.u32 %s35, 1
        %s240 = scalar_lea.sflag [#allocation3], %s239
        %s241 = sand.u32 %s35, 1
        %s242 = smul.addr %s241, 8
        %s243 = scalar_lea.vmem [#allocation2], %s242
        %p244 = pneg %p48
        %p245 = pneg %p45
        %p246 = pneg %p69
        %p247 = pneg %p66
        %p248 = pneg %p90
        %p249 = pneg %p87
        %p250 = pneg %p111
        %p251 = pneg %p108
        %p252 = pneg %p137
        %p253 = pneg %p134
        %s254 = sand.u32 %s124, 1
        %s255 = scalar_lea.sflag [#allocation4], %s254
        %s256 = sand.u32 %s124, 1
        %s257 = smul.addr %s256, 4
        %s258 = scalar_lea.vmem [#allocation7], %s257
        %p259 = pneg %p163
        %p260 = pneg %p160
        %s261 = sand.u32 %s150, 1
        %s262 = scalar_lea.sflag [#allocation9], %s261
        %s263 = sand.u32 %s150, 1
        %s264 = smul.addr %s263, 8
        %s265 = scalar_lea.vmem [#allocation8], %s264
        %v267 = vld [vmem:[%s230] sm:$0xff]
        %vm268 = vcmask 261120
        %v269 = vsel %vm268, %v267, 0.0
        %270 = vadd.xlane.f32.xlu0 %v269
        %v271 = vpop.xlane.xlu0 %270
        %v272 = vrcp.pop 32.0
        %v273 = vmul.f32 %v271, %v272
        %v274 = vsub.f32 %v267, %v273
        %v275 = vmul.f32 %v274, %v274
        %v276 = vsel %vm268, %v275, 0.0
        %277 = vadd.xlane.f32.xlu0 %v276
        %v278 = vpop.xlane.xlu0 %277
        %v279 = vmul.f32 %v278, %v272
        %v280 = vadd.f32 %v279, 1e-05
        %v281 = vrsqrt.pop %v280
        %v282 = vmul.f32 %v274, %v281
        %v283 = vld [vmem:[%s1] sm:$0x1]
        %v285 = vlaneseq
        %v286 = vshrl.u32 %v285, 7
        %v287 = vsub.s32 0, %v286
        %v288 = vrot.slane %v283, %v287
        %v290 = vmul.f32 %v282, %v288
        %v291 = vld [vmem:[%s2] sm:$0x1]
        %v293 = vlaneseq
        %v294 = vshrl.u32 %v293, 7
        %v295 = vsub.s32 0, %v294
        %v296 = vrot.slane %v291, %v295
        %v298 = vadd.f32 %v290, %v296
        %v299 = vpack.c.bf16 %v298, %v298
        %vm300 = vcmask 257024
        %301 = vst.msk [vmem:[%s258] sm:$0xf] %vm300, %v299
        %v302 = vld [vmem:[#allocation5] sm:$0xf]
        %v303 = vld [vmem:[#allocation5 + $0x4] sm:$0xf]
        %v304 = vld [vmem:[#allocation5 + $0x8] sm:$0xf]
        %v305 = vld [vmem:[#allocation5 + $0xc] sm:$0xf]
        %v310 = vunpack.c.l.b16 %v302
        %v311 = vunpack.c.l.b16 %v303
        %v312 = vunpack.c.l.b16 %v304
        %v313 = vunpack.c.l.b16 %v305
        %v314 = vpack.c.b16 %v311, %v310
        %v315 = vpack.c.b16 %v313, %v312
        %v319 = vsel %vm268, %v299, 0
        %321 = vmatprep.subr.bf16.mxu0 0
        %322 = vmatpush1.bf16.msra.mxu0 0
        %323 = vmatprep.subr.bf16.mxu0 0
        %324 = vmatpush1.bf16.msra.mxu0 0
        %325 = vmatprep.subr.bf16.mxu0 0
        %326 = vmatpush1.bf16.msra.mxu0 0
        %327 = vmatprep.subr.bf16.mxu0 0
        %328 = vmatpush1.bf16.msra.mxu0 0
        %329 = vmatprep.subr.bf16.mxu0 0
        %330 = vmatpush1.bf16.msra.mxu0 0
        %331 = vmatprep.subr.bf16.mxu0 0
        %332 = vmatpush1.bf16.msra.mxu0 0
        %333 = vmatprep.subr.bf16.mxu0 0
        %334 = vmatpush1.bf16.msra.mxu0 %v315
        %335 = vmatprep.subr.bf16.mxu0 0
        %336 = vmatpush1.bf16.msra.mxu0 %v314
        %337 = vmatprep.subr.bf16.mxu0 0
        %338 = vmatpush2.bf16.msra.mxu0 0
        %339 = vmatprep.subr.bf16.mxu0 0
        %340 = vmatpush2.bf16.msra.mxu0 0
        %341 = vmatprep.subr.bf16.mxu0 0
        %342 = vmatpush2.bf16.msra.mxu0 0
        %343 = vmatprep.subr.bf16.mxu0 0
        %344 = vmatpush2.bf16.msra.mxu0 0
        %345 = vmatprep.subr.bf16.mxu0 0
        %346 = vmatpush2.bf16.msra.mxu0 0
        %347 = vmatprep.subr.bf16.mxu0 0
        %348 = vmatpush2.bf16.msra.mxu0 0
        %349 = vmatprep.subr.bf16.mxu0 0
        %350 = vmatpush2.bf16.msra.mxu0 0
        %351 = vmatprep.subr.bf16.mxu0 0
        %352 = vmatpush2.bf16.msra.mxu0 0
        %353 = vmatprep.mubr.bf16.mxu0 0
        %354 = vmatmul.mubr.bf16.gmra.mxu0 %v319
        %v355 = vpop.f32.mrf.mxu0
        %v356 = vadd.f32 0.0, %v355
        %v357 = vpop.f32.mrf.mxu0
        %v358 = vpop.f32.mrf.mxu0
        %v359 = vpop.f32.mrf.mxu0
        %360 = vdwg.mxu0
        %v361 = vlaneseq
        %v362 = vand.u32 %v361, 127
        %vm363 = vcmp.lt.s32.totalorder %v362, 4
        %v364 = vsel %vm363, %v356, -1e+30
        %365 = vmax.xlane.f32.xlu0 %v364
        %v366 = vpop.xlane.xlu0 %365
        %v367 = vsub.f32 %v364, %v366
        %v368 = vmul.f32 %v367, 1.442695
        %v369 = vpow.pop %v368
        %370 = vadd.xlane.f32.xlu0 %v369
        %v371 = vpop.xlane.xlu0 %370
        %v372 = vrcp.pop %v371
        %v373 = vmul.f32 %v369, %v372
        %374 = vst [vmem:[%s265] sm:$0xff] %v373
        %s375 = sand.u32 %s124, 1
        %s376 = scalar_lea.sflag [#allocation4], %s375
        %s377 = sand.u32 %s124, 1
        %s378 = smul.addr %s377, 4
        %s379 = scalar_lea.vmem [#allocation7], %s378
        %s380 = sand.u32 %s150, 1
        %s381 = scalar_lea.sflag [#allocation9], %s380
        %s382 = sand.u32 %s150, 1
        %s383 = smul.addr %s382, 8
        %s384 = scalar_lea.vmem [#allocation8], %s383
        // Predicated region
        $region45: #{tpu_custom_call.1} parent=35 // pred_check
          %p385 = pneg %p134
        $region46: #{tpu_custom_call.1} parent=35 // pred_check_branch
          %387 = sbr.rel (%p385) target = $region48
        $region47: #{tpu_custom_call.1} parent=35 // pred_region
          %s389 = ssub.s32 64, 64
          %390 = vsyncadd %s376, %s389
          %s391 = smul.addr %s27, 64
          %s392 = scalar_lea.hbm %s4, %s391
          %s394 = sshll.u32 %s379, 4
          %s395 = int_to_ptr.vmem [resolvable:$true] %s394
          %397 = dma.vmem_to_hbm [thread:$0]  %s395, 64, %s392, %s376
        $region48: #{tpu_custom_call.1} parent=35 // pred_fallthru
          _
        // Predicated region
        $region49: #{tpu_custom_call.1} parent=35 // pred_check
          %p398 = pneg %p160
        $region50: #{tpu_custom_call.1} parent=35 // pred_check_branch
          %400 = sbr.rel (%p398) target = $region52
        $region51: #{tpu_custom_call.1} parent=35 // pred_region
          %s402 = ssub.s32 128, 128
          %403 = vsyncadd %s381, %s402
          %s404 = smul.addr %s27, 128
          %s405 = scalar_lea.hbm %s5, %s404
          %s407 = sshll.u32 %s384, 4
          %s408 = int_to_ptr.vmem [resolvable:$true] %s407
          %410 = dma.vmem_to_hbm [thread:$0]  %s408, 128, %s405, %s381
        $region52: #{tpu_custom_call.1} parent=35 // pred_fallthru
          _
      $region36: #{tpu_custom_call.1} parent=5 // pred_fallthru
        _
      %p411 = scmp.le.s32.totalorder 2, %s22
      // Predicated region
      $region53: #{tpu_custom_call.1} parent=5 // pred_check
        %p412 = pneg %p411
      $region54: #{tpu_custom_call.1} parent=5 // pred_check_branch
        %414 = sbr.rel (%p412) target = $region56
      $region55: #{tpu_custom_call.1} parent=5 // pred_region
        %s415 = ssub.s32 %s22, 2
        // Predicated region
        $region57: #{tpu_custom_call.1} parent=55 // pred_check
          %p416 = pneg %p140
        $region58: #{tpu_custom_call.1} parent=55 // pred_check_branch
          %418 = sbr.rel (%p416) target = $region60
        $region59: #{tpu_custom_call.1} parent=55 // pred_region
          %s419 = sand.u32 %s125, 1
          %s420 = scalar_lea.sflag [#allocation4], %s419
          %s421 = sand.u32 %s125, 1
          %s422 = smul.addr %s421, 4
          %s423 = scalar_lea.vmem [#allocation7], %s422
          %424 = dma.done %s420, 64
        $region60: #{tpu_custom_call.1} parent=55 // pred_fallthru
          _
        // Predicated region
        $region61: #{tpu_custom_call.1} parent=55 // pred_check
          %p425 = pneg %p166
        $region62: #{tpu_custom_call.1} parent=55 // pred_check_branch
          %427 = sbr.rel (%p425) target = $region64
        $region63: #{tpu_custom_call.1} parent=55 // pred_region
          %s428 = sand.u32 %s151, 1
          %s429 = scalar_lea.sflag [#allocation9], %s428
          %s430 = sand.u32 %s151, 1
          %s431 = smul.addr %s430, 8
          %s432 = scalar_lea.vmem [#allocation8], %s431
          %433 = dma.done %s429, 128
        $region64: #{tpu_custom_call.1} parent=55 // pred_fallthru
          _
      $region56: #{tpu_custom_call.1} parent=5 // pred_fallthru
        _
    $region6: #{tpu_custom_call.1} parent=1 // loop_footer
      %s26 = sadd.s32 1, %s22
    $region7: #{tpu_custom_call.1} parent=1 // loop_footer_branch
      %21 = sbr.rel target = $region3
    $region8: #{tpu_custom_call.1} parent=1 // loop_exit
      _
    %434 = vsyncpa [#allocation3], 1
    %s435 = scalar_lea.sflag [#allocation3], 1
    %436 = vsyncpa %s435, 1
    %437 = vsyncpa [#allocation6], 1
    %438 = vsyncpa [#allocation4], 1
    %s439 = scalar_lea.sflag [#allocation4], 1
    %440 = vsyncpa %s439, 1
    %441 = vsyncpa [#allocation9], 1
    %s442 = scalar_lea.sflag [#allocation9], 1
    %443 = vsyncpa %s442, 1

</llo_original>
